<compile_context>
chip_gen: v6e
topology: v6e:2x2x1
jax: 0.10.0
libtpu: 0.0.40
codegen_flags: <defaults>
</compile_context>

<pallas_src>
import math
import jax
import jax.numpy as jnp
from jax.experimental import pallas as pl
from jax.experimental.pallas import tpu as pltpu

__HLCNUMBER_TO_HLC__ = {0: 'right', 1: 'left', 2: 'straight', 3: 'follow_lane'}

_LANE = 128      # lane width (last dim) for hidden activations
_SUBLANE = 8     # sublane width (second-to-last dim)
_MAX_TB = 2048   # batch tile (multiple of 8). Working set @2048 is only a few MiB.


def _round_up(x: int, m: int) -> int:
    return ((x + m - 1) // m) * m


# ---------------------------------------------------------------------------
# Pallas kernel: ThreeLayerMLP forward  (fc1 -> ReLU -> fc2 -> ReLU -> fc3)
# The branch was already selected by the BlockSpec index_maps (via hlc_ref),
# so the body is a plain MLP on one batch tile.
# ---------------------------------------------------------------------------
def actor_mlp_kernel(hlc_ref, x_ref, w1_ref, b1_ref, w2_ref, b2_ref,
                     w3_ref, b3_ref, o_ref):
    del hlc_ref  # branch selection happens in the index_maps
    x = x_ref[...]                                                     # (TB, D)
    h1 = jnp.dot(x, w1_ref[...], preferred_element_type=jnp.float32) + b1_ref[...]
    h1 = jnp.maximum(h1, 0.0)                                          # ReLU
    h2 = jnp.dot(h1, w2_ref[...], preferred_element_type=jnp.float32) + b2_ref[...]
    h2 = jnp.maximum(h2, 0.0)                                          # ReLU
    o_ref[...] = jnp.dot(h2, w3_ref[...],
                         preferred_element_type=jnp.float32) + b3_ref[...]


def _branch_spec(rows, cols):
    # Stacked-branch parameter: leading (branch) dim squeezed away, branch index
    # taken from the scalar-prefetch hlc ref; block index constant across the
    # batch grid so the tile stays VMEM-resident across all grid steps.
    return pl.BlockSpec((None, rows, cols), lambda i, hlc: (hlc[0], 0, 0))


def run_branch_mlp(hlc_arr, x, packed, tb):
    """x: (B, D) f32 (unpadded). tb: batch tile, multiple of 8."""
    b, d = x.shape
    w1, b1, w2, b2, w3, b3 = (packed[k] for k in ('w1', 'b1', 'w2', 'b2', 'w3', 'b3'))
    h1 = w1.shape[2]
    h2 = w2.shape[2]
    out = w3.shape[2]

    grid = (pl.cdiv(b, tb),)   # ragged last block handled by Pallas (masked stores)
    return pl.pallas_call(
        actor_mlp_kernel,
        out_shape=jax.ShapeDtypeStruct((b, out), jnp.float32),
        grid_spec=pltpu.PrefetchScalarGridSpec(
            num_scalar_prefetch=1,              # hlc_arr -> SMEM, feeds index_maps
            grid=grid,
            in_specs=[
                pl.BlockSpec((tb, d), lambda i, hlc: (i, 0)),   # batch tile (unpadded D)
                _branch_spec(d, h1),  _branch_spec(1, h1),
                _branch_spec(h1, h2), _branch_spec(1, h2),
                _branch_spec(h2, out), _branch_spec(1, out),
            ],
            out_specs=pl.BlockSpec((tb, out), lambda i, hlc: (i, 0)),
        ),
        compiler_params=pltpu.CompilerParams(
            dimension_semantics=("parallel",)),   # batch tiles are independent
    )(hlc_arr, x, w1, b1, w2, b2, w3, b3)


# ---------------------------------------------------------------------------
# Parameter setup (mirrors torch.nn.Linear default init, per-branch keys)
# ---------------------------------------------------------------------------
def init_linear(key, fan_in, fan_out):
    kw, kb = jax.random.split(key)
    bound = 1.0 / math.sqrt(fan_in)
    w = jax.random.uniform(kw, (fan_in, fan_out), jnp.float32, -bound, bound)
    b = jax.random.uniform(kb, (fan_out,), jnp.float32, -bound, bound)
    return w, b


def init_actor_branches(key, input_size, hidden_size, out_dim):
    branches = {}
    for name in ('left', 'right', 'follow_lane', 'straight'):
        key, k1, k2, k3 = jax.random.split(key, 4)
        w1, b1 = init_linear(k1, input_size, hidden_size)
        w2, b2 = init_linear(k2, hidden_size, hidden_size // 2)
        w3, b3 = init_linear(k3, hidden_size // 2, out_dim)
        branches[name] = (w1, b1, w2, b2, w3, b3)
    return branches


def pack_actor_params(branch_params, input_size, hidden_size, out_dim):
    """Stack the 4 branches (hlc order).  The input contraction dim and the output
    dim stay UNpadded (less HBM traffic); hidden dims are zero-padded to 128 lanes
    so intermediate activations are lane-dense.  Zero padding is inert through
    Linear+ReLU, so the math is exact."""
    h1_pad = _round_up(hidden_size, _LANE)
    h2_pad = _round_up(hidden_size // 2, _LANE)

    def pad_w(w, r, c):
        return jnp.zeros((r, c), jnp.float32).at[:w.shape[0], :w.shape[1]].set(w)

    def pad_b(b, c):
        return jnp.zeros((1, c), jnp.float32).at[0, :b.shape[0]].set(b)

    stacks = {k: [] for k in ('w1', 'b1', 'w2', 'b2', 'w3', 'b3')}
    for hlc in range(4):
        w1, b1, w2, b2, w3, b3 = branch_params[__HLCNUMBER_TO_HLC__[hlc]]
        stacks['w1'].append(pad_w(w1, input_size, h1_pad))   # K unpadded
        stacks['b1'].append(pad_b(b1, h1_pad))
        stacks['w2'].append(pad_w(w2, h1_pad, h2_pad))
        stacks['b2'].append(pad_b(b2, h2_pad))
        stacks['w3'].append(pad_w(w3, h2_pad, out_dim))       # N unpadded
        stacks['b3'].append(pad_b(b3, out_dim))

    packed = {k: jnp.stack(v) for k, v in stacks.items()}
    packed['in_dim'] = input_size
    packed['out_dim'] = out_dim
    return packed


# ---------------------------------------------------------------------------
# Forward wrappers
# ---------------------------------------------------------------------------
def actor_forward(packed, encoding, hlc):
    """encoding: (B, ...) -> flattened from dim 1, like torch.flatten(x, start_dim=1)."""
    # TODO(synk): the torch obs-type dispatch (list/tuple/dict -> tensor stacking on
    # a device) is host-side plumbing with no Pallas equivalent; we take the already
    # stacked encoding array directly.
    b = encoding.shape[0]
    x = encoding.reshape(b, -1).astype(jnp.float32)
    assert x.shape[1] == packed['in_dim'], "encoding feature size mismatch"

    tb = min(_MAX_TB, _round_up(max(b, _SUBLANE), _SUBLANE))  # multiple of 8
    hlc_arr = jnp.asarray([hlc], dtype=jnp.int32)

    # No batch/feature padding and no post-kernel slice: output is already (B, out_dim).
    return run_branch_mlp(hlc_arr, x, packed, tb)


def actor_forward_ref(branch_params, encoding, hlc):
    b = encoding.shape[0]
    x = encoding.reshape(b, -1).astype(jnp.float32)
    w1, b1, w2, b2, w3, b3 = branch_params[__HLCNUMBER_TO_HLC__[hlc]]
    h1 = jnp.maximum(x @ w1 + b1, 0.0)
    h2 = jnp.maximum(h1 @ w2 + b2, 0.0)
    return h2 @ w3 + b3


# ---------------------------------------------------------------------------
if __name__ == "__main__":
    # Small shapes consistent with the module: encoding (B, 4, 4) -> input_size 16,
    # hidden 32, action_dim 2, output_factor 2 -> output (B, 4).
    input_size = 16
    hidden_size = 32
    action_dim = 2
    output_factor = 2
    out_dim = action_dim * output_factor

    key = jax.random.PRNGKey(0)
    kp, ke1, ke2 = jax.random.split(key, 3)

    branch_params = init_actor_branches(kp, input_size, hidden_size, out_dim)
    packed = pack_actor_params(branch_params, input_size, hidden_size, out_dim)

    # Case 1: batch=2, hlc=3 ('follow_lane')
    batch = 2
    encoding = jax.random.normal(ke1, (batch, 4, 4), jnp.float32)   # stacked obs['encoding']
    hlc = 3
    out = jax.block_until_ready(actor_forward(packed, encoding, hlc))
    ref = actor_forward_ref(branch_params, encoding, hlc)
    assert out.shape == (batch, out_dim)
    assert jnp.allclose(out, ref, atol=1e-5, rtol=1e-5)

    # Case 2: ragged batch (not a multiple of 8), different branch.
    batch2 = 13
    encoding2 = jax.random.normal(ke2, (batch2, 4, 4), jnp.float32)
    hlc2 = 0  # 'right'
    out2 = jax.block_until_ready(actor_forward(packed, encoding2, hlc2))
    ref2 = actor_forward_ref(branch_params, encoding2, hlc2)
    assert out2.shape == (batch2, out_dim)
    assert jnp.allclose(out2, ref2, atol=1e-5, rtol=1e-5)

    print("KERNEL_OK")
</pallas_src>

<mosaic_0001>
module attributes {stable_mosaic.version = 11 : i64} {
  func.func @actor_mlp_kernel(%arg0: i32, %arg1: memref<1xi32, #tpu.memory_space<smem>>, %arg2: memref<8x16xf32, #tpu.memory_space<vmem>>, %arg3: memref<1x16x128xf32, #tpu.memory_space<vmem>>, %arg4: memref<1x1x128xf32, #tpu.memory_space<vmem>>, %arg5: memref<1x128x128xf32, #tpu.memory_space<vmem>>, %arg6: memref<1x1x128xf32, #tpu.memory_space<vmem>>, %arg7: memref<1x128x4xf32, #tpu.memory_space<vmem>>, %arg8: memref<1x1x4xf32, #tpu.memory_space<vmem>>, %arg9: memref<8x4xf32, #tpu.memory_space<vmem>>) attributes {dimension_semantics = [#tpu.dimension_semantics<parallel>], iteration_bounds = array<i64: 1>, scalar_prefetch = 1 : i64, scratch_operands = 0 : i64, tpu.core_type = #tpu.core_type<tc>, window_params = [{transform_indices = @transform_0, window_bounds = array<i64: 8, 16>}, {transform_indices = @transform_1, window_bounds = array<i64: 1, 16, 128>}, {transform_indices = @transform_2, window_bounds = array<i64: 1, 1, 128>}, {transform_indices = @transform_3, window_bounds = array<i64: 1, 128, 128>}, {transform_indices = @transform_4, window_bounds = array<i64: 1, 1, 128>}, {transform_indices = @transform_5, window_bounds = array<i64: 1, 128, 4>}, {transform_indices = @transform_6, window_bounds = array<i64: 1, 1, 4>}, {transform_indices = @transform_7, window_bounds = array<i64: 8, 4>}]} {
    %c0 = arith.constant 0 : index
    %c0_0 = arith.constant 0 : index
    %0 = vector.load %arg2[%c0, %c0_0] : memref<8x16xf32, #tpu.memory_space<vmem>>, vector<8x16xf32>
    %c0_1 = arith.constant 0 : index
    %c0_2 = arith.constant 0 : index
    %c0_3 = arith.constant 0 : index
    %1 = vector.load %arg3[%c0_1, %c0_2, %c0_3] : memref<1x16x128xf32, #tpu.memory_space<vmem>>, vector<1x16x128xf32>
    %2 = vector.shape_cast %1 : vector<1x16x128xf32> to vector<16x128xf32>
    %cst = arith.constant dense<0.000000e+00> : vector<8x128xf32>
    %3 = tpu.matmul %0, %2, %cst {dimension_numbers = #tpu.dot_dimension_numbers<[1], [0], [0], [1], [0, 0, 1, 1], [], []>} : vector<8x16xf32>, vector<16x128xf32>, vector<8x128xf32> -> vector<8x128xf32>
    %c0_4 = arith.constant 0 : index
    %c0_5 = arith.constant 0 : index
    %c0_6 = arith.constant 0 : index
    %4 = vector.load %arg4[%c0_4, %c0_5, %c0_6] : memref<1x1x128xf32, #tpu.memory_space<vmem>>, vector<1x1x128xf32>
    %5 = vector.shape_cast %4 : vector<1x1x128xf32> to vector<1x128xf32>
    %6 = vector.broadcast %5 : vector<1x128xf32> to vector<8x128xf32>
    %7 = arith.addf %3, %6 : vector<8x128xf32>
    %cst_7 = arith.constant 0.000000e+00 : f32
    %8 = vector.broadcast %cst_7 : f32 to vector<8x128xf32>
    %9 = arith.maximumf %7, %8 : vector<8x128xf32>
    %c0_8 = arith.constant 0 : index
    %c0_9 = arith.constant 0 : index
    %c0_10 = arith.constant 0 : index
    %10 = vector.load %arg5[%c0_8, %c0_9, %c0_10] : memref<1x128x128xf32, #tpu.memory_space<vmem>>, vector<1x128x128xf32>
    %11 = vector.shape_cast %10 : vector<1x128x128xf32> to vector<128x128xf32>
    %cst_11 = arith.constant dense<0.000000e+00> : vector<8x128xf32>
    %12 = tpu.matmul %9, %11, %cst_11 {dimension_numbers = #tpu.dot_dimension_numbers<[1], [0], [0], [1], [0, 0, 1, 1], [], []>} : vector<8x128xf32>, vector<128x128xf32>, vector<8x128xf32> -> vector<8x128xf32>
    %c0_12 = arith.constant 0 : index
    %c0_13 = arith.constant 0 : index
    %c0_14 = arith.constant 0 : index
    %13 = vector.load %arg6[%c0_12, %c0_13, %c0_14] : memref<1x1x128xf32, #tpu.memory_space<vmem>>, vector<1x1x128xf32>
    %14 = vector.shape_cast %13 : vector<1x1x128xf32> to vector<1x128xf32>
    %15 = vector.broadcast %14 : vector<1x128xf32> to vector<8x128xf32>
    %16 = arith.addf %12, %15 : vector<8x128xf32>
    %cst_15 = arith.constant 0.000000e+00 : f32
    %17 = vector.broadcast %cst_15 : f32 to vector<8x128xf32>
    %18 = arith.maximumf %16, %17 : vector<8x128xf32>
    %c0_16 = arith.constant 0 : index
    %c0_17 = arith.constant 0 : index
    %c0_18 = arith.constant 0 : index
    %19 = vector.load %arg7[%c0_16, %c0_17, %c0_18] : memref<1x128x4xf32, #tpu.memory_space<vmem>>, vector<1x128x4xf32>
    %20 = vector.shape_cast %19 : vector<1x128x4xf32> to vector<128x4xf32>
    %cst_19 = arith.constant dense<0.000000e+00> : vector<8x4xf32>
    %21 = tpu.matmul %18, %20, %cst_19 {dimension_numbers = #tpu.dot_dimension_numbers<[1], [0], [0], [1], [0, 0, 1, 1], [], []>} : vector<8x128xf32>, vector<128x4xf32>, vector<8x4xf32> -> vector<8x4xf32>
    %c0_20 = arith.constant 0 : index
    %c0_21 = arith.constant 0 : index
    %c0_22 = arith.constant 0 : index
    %22 = vector.load %arg8[%c0_20, %c0_21, %c0_22] : memref<1x1x4xf32, #tpu.memory_space<vmem>>, vector<1x1x4xf32>
    %23 = vector.shape_cast %22 : vector<1x1x4xf32> to vector<1x4xf32>
    %24 = vector.broadcast %23 : vector<1x4xf32> to vector<8x4xf32>
    %25 = arith.addf %21, %24 : vector<8x4xf32>
    %c0_23 = arith.constant 0 : index
    %c0_24 = arith.constant 0 : index
    %26 = vector.load %arg9[%c0_23, %c0_24] : memref<8x4xf32, #tpu.memory_space<vmem>>, vector<8x4xf32>
    tpu.vector_store %arg9[%c0_23, %c0_24], %25 {strides = array<i32>} : memref<8x4xf32, #tpu.memory_space<vmem>>, vector<8x4xf32>,
    return
  }
  func.func @transform_0(%arg0: i32, %arg1: memref<1xi32, #tpu.memory_space<smem>>) -> (i32, i32) {
    %c0_i32 = arith.constant 0 : i32
    %c0_i32_0 = arith.constant 0 : i32
    return %arg0, %c0_i32 : i32, i32
  }
  func.func @transform_1(%arg0: i32, %arg1: memref<1xi32, #tpu.memory_space<smem>>) -> (i32, i32, i32) {
    %c0 = arith.constant 0 : index
    %0 = memref.load %arg1[%c0] : memref<1xi32, #tpu.memory_space<smem>>
    %c0_i32 = arith.constant 0 : i32
    %c0_i32_0 = arith.constant 0 : i32
    %c0_i32_1 = arith.constant 0 : i32
    return %0, %c0_i32, %c0_i32_0 : i32, i32, i32
  }
  func.func @transform_2(%arg0: i32, %arg1: memref<1xi32, #tpu.memory_space<smem>>) -> (i32, i32, i32) {
    %c0 = arith.constant 0 : index
    %0 = memref.load %arg1[%c0] : memref<1xi32, #tpu.memory_space<smem>>
    %c0_i32 = arith.constant 0 : i32
    %c0_i32_0 = arith.constant 0 : i32
    %c0_i32_1 = arith.constant 0 : i32
    return %0, %c0_i32, %c0_i32_0 : i32, i32, i32
  }
  func.func @transform_3(%arg0: i32, %arg1: memref<1xi32, #tpu.memory_space<smem>>) -> (i32, i32, i32) {
    %c0 = arith.constant 0 : index
    %0 = memref.load %arg1[%c0] : memref<1xi32, #tpu.memory_space<smem>>
    %c0_i32 = arith.constant 0 : i32
    %c0_i32_0 = arith.constant 0 : i32
    %c0_i32_1 = arith.constant 0 : i32
    return %0, %c0_i32, %c0_i32_0 : i32, i32, i32
  }
  func.func @transform_4(%arg0: i32, %arg1: memref<1xi32, #tpu.memory_space<smem>>) -> (i32, i32, i32) {
    %c0 = arith.constant 0 : index
    %0 = memref.load %arg1[%c0] : memref<1xi32, #tpu.memory_space<smem>>
    %c0_i32 = arith.constant 0 : i32
    %c0_i32_0 = arith.constant 0 : i32
    %c0_i32_1 = arith.constant 0 : i32
    return %0, %c0_i32, %c0_i32_0 : i32, i32, i32
  }
  func.func @transform_5(%arg0: i32, %arg1: memref<1xi32, #tpu.memory_space<smem>>) -> (i32, i32, i32) {
    %c0 = arith.constant 0 : index
    %0 = memref.load %arg1[%c0] : memref<1xi32, #tpu.memory_space<smem>>
    %c0_i32 = arith.constant 0 : i32
    %c0_i32_0 = arith.constant 0 : i32
    %c0_i32_1 = arith.constant 0 : i32
    return %0, %c0_i32, %c0_i32_0 : i32, i32, i32
  }
  func.func @transform_6(%arg0: i32, %arg1: memref<1xi32, #tpu.memory_space<smem>>) -> (i32, i32, i32) {
    %c0 = arith.constant 0 : index
    %0 = memref.load %arg1[%c0] : memref<1xi32, #tpu.memory_space<smem>>
    %c0_i32 = arith.constant 0 : i32
    %c0_i32_0 = arith.constant 0 : i32
    %c0_i32_1 = arith.constant 0 : i32
    return %0, %c0_i32, %c0_i32_0 : i32, i32, i32
  }
  func.func @transform_7(%arg0: i32, %arg1: memref<1xi32, #tpu.memory_space<smem>>) -> (i32, i32) {
    %c0_i32 = arith.constant 0 : i32
    %c0_i32_0 = arith.constant 0 : i32
    return %arg0, %c0_i32 : i32, i32
  }
}

</mosaic_0001>

<llo_original>
// kernel: tpu_custom_call.1
$region0: #{tpu_custom_call.1}
  #allocation0 [shape = 'u32[]', space=smem, size = 0x4, offset = 0x4, fixed_abs, tag = 'smem constant byte address 0x4 - core index']
  #allocation1 [shape = 'u32[144,128]{1,0:T(1,128)}', space=vmem, size = 0x12000, scoped, tag = 'internal scratch']
  #allocation2 [shape = 's32[1]{0}', space=sflag, size = 0x4, scoped, tag = 'scoped memory for tpu_custom_call.1']
  #allocation3 [shape = 's32[1]{0:T(128)S(6)}', space=smem, size = 0x200, scoped, tag = 'prefetched SMEM operand 0']
  %s0 = inlined_call_operand.<no memory space> [shape: s32[1], index: 0, kind: input, shape index: {}]
  %s1 = inlined_call_operand.vmem [shape: f32[2,16], index: 1, kind: input, shape index: {}]
  %s2 = inlined_call_operand.hbm [shape: f32[4,16,128], index: 2, kind: input, shape index: {}]
  %s3 = inlined_call_operand.vmem [shape: f32[4,1,128], index: 3, kind: input, shape index: {}]
  %s4 = inlined_call_operand.vmem [shape: f32[4,128,128], index: 4, kind: input, shape index: {}]
  %s5 = inlined_call_operand.vmem [shape: f32[4,1,128], index: 5, kind: input, shape index: {}]
  %s6 = inlined_call_operand.vmem [shape: f32[4,128,4], index: 6, kind: input, shape index: {}]
  %s7 = inlined_call_operand.vmem [shape: f32[4,1,4], index: 7, kind: input, shape index: {}]
  %s8 = inlined_call_operand.hbm [shape: f32[2,4], index: 8, kind: output, shape index: {}]
  %s9 = sld [smem:[#allocation0]]
  $region42: #{tpu_custom_call.1} parent=0
    _
  %s11 = ssub.s32 1, %s9
  %s12 = scalar_select 0, %s11, %s9
  %13 = sst [smem:[#allocation3]] %s0
  $region1: #{tpu_custom_call.1} parent=0
    #allocation4 [shape = 'u8[8192]{0}', space=vmem, size = 0x2000, scoped, tag = 'input window, operand 2, single buffered']
    #allocation5 [shape = 's32[1]{0}', space=sflag, size = 0x4, scoped, tag = 'scoped memory for tpu_custom_call.1']
    #allocation6 [shape = 's32[1]{0}', space=sflag, size = 0x4, scoped, tag = 'scoped memory for tpu_custom_call.1']
    #allocation7 [shape = 'u8[4096]{0}', space=vmem, size = 0x1000, scoped, tag = 'output window, operand 0, single buffered']
    %14 = vsyncpa [#allocation5], 0
    %15 = vsyncpa [#allocation6], 0
    // Predicated region
    $region2: #{tpu_custom_call.1} parent=1 // pred_check
      _
    $region3: #{tpu_custom_call.1} parent=1 // pred_check_branch
      %17 = sbr.rel (0) target = $region5
    $region4: #{tpu_custom_call.1} parent=1 // pred_region
      _
    $region5: #{tpu_custom_call.1} parent=1 // pred_fallthru
      _
    // Predicated region
    $region6: #{tpu_custom_call.1} parent=1 // pred_check
      _
    $region7: #{tpu_custom_call.1} parent=1 // pred_check_branch
      %19 = sbr.rel (0) target = $region9
    $region8: #{tpu_custom_call.1} parent=1 // pred_region
      %s20 = sld [smem:[#allocation3]]
      %s22 = ssub.s32 256, 256
      %23 = vsyncadd [#allocation5], %s22
      %s24 = smul.addr %s20, 2
      %s25 = smul.addr %s24, 128
      %s26 = scalar_lea.hbm %s2, %s25
      %s27 = sshll.u32 [#allocation4], 4
      %s28 = int_to_ptr.vmem [resolvable:$true] %s27
      %33 = dma.hbm_to_vmem [thread:$0]  %s26, 256, %s28, [#allocation5], 128, 128, 8
    $region9: #{tpu_custom_call.1} parent=1 // pred_fallthru
      _
    // Predicated region
    $region10: #{tpu_custom_call.1} parent=1 // pred_check
      _
    $region11: #{tpu_custom_call.1} parent=1 // pred_check_branch
      %35 = sbr.rel (0) target = $region13
    $region12: #{tpu_custom_call.1} parent=1 // pred_region
      %s36 = sld [smem:[#allocation3]]
      %p37 = scmp.lt.s32.totalorder %s36, 3
      %s38 = scalar_select %p37, %s36, 3
      %s39 = scalar_lea.vmem %s3, %s38
      %s40 = sld [smem:[#allocation3]]
    $region13: #{tpu_custom_call.1} parent=1 // pred_fallthru
      _
    // Predicated region
    $region14: #{tpu_custom_call.1} parent=1 // pred_check
      _
    $region15: #{tpu_custom_call.1} parent=1 // pred_check_branch
      %42 = sbr.rel (0) target = $region17
    $region16: #{tpu_custom_call.1} parent=1 // pred_region
      %s43 = sld [smem:[#allocation3]]
      %p44 = scmp.lt.s32.totalorder %s43, 3
      %s45 = scalar_select %p44, %s43, 3
      %s46 = smul.addr %s45, 16
      %s47 = smul.addr %s46, 8
      %s48 = scalar_lea.vmem %s4, %s47
      %s49 = sld [smem:[#allocation3]]
    $region17: #{tpu_custom_call.1} parent=1 // pred_fallthru
      _
    // Predicated region
    $region18: #{tpu_custom_call.1} parent=1 // pred_check
      _
    $region19: #{tpu_custom_call.1} parent=1 // pred_check_branch
      %51 = sbr.rel (0) target = $region21
    $region20: #{tpu_custom_call.1} parent=1 // pred_region
      %s52 = sld [smem:[#allocation3]]
      %p53 = scmp.lt.s32.totalorder %s52, 3
      %s54 = scalar_select %p53, %s52, 3
      %s55 = scalar_lea.vmem %s5, %s54
      %s56 = sld [smem:[#allocation3]]
    $region21: #{tpu_custom_call.1} parent=1 // pred_fallthru
      _
    // Predicated region
    $region22: #{tpu_custom_call.1} parent=1 // pred_check
      _
    $region23: #{tpu_custom_call.1} parent=1 // pred_check_branch
      %58 = sbr.rel (0) target = $region25
    $region24: #{tpu_custom_call.1} parent=1 // pred_region
      %s59 = sld [smem:[#allocation3]]
      %p60 = scmp.lt.s32.totalorder %s59, 3
      %s61 = scalar_select %p60, %s59, 3
      %s62 = smul.addr %s61, 16
      %s63 = smul.addr %s62, 8
      %s64 = scalar_lea.vmem %s6, %s63
      %s65 = sld [smem:[#allocation3]]
    $region25: #{tpu_custom_call.1} parent=1 // pred_fallthru
      _
    // Predicated region
    $region26: #{tpu_custom_call.1} parent=1 // pred_check
      _
    $region27: #{tpu_custom_call.1} parent=1 // pred_check_branch
      %67 = sbr.rel (0) target = $region29
    $region28: #{tpu_custom_call.1} parent=1 // pred_region
      %s68 = sld [smem:[#allocation3]]
      %p69 = scmp.lt.s32.totalorder %s68, 3
      %s70 = scalar_select %p69, %s68, 3
      %s71 = scalar_lea.vmem %s7, %s70
      %s72 = sld [smem:[#allocation3]]
    $region29: #{tpu_custom_call.1} parent=1 // pred_fallthru
      _
    // Predicated region
    $region30: #{tpu_custom_call.1} parent=1 // pred_check
      _
    $region31: #{tpu_custom_call.1} parent=1 // pred_check_branch
      %74 = sbr.rel (0) target = $region33
    $region32: #{tpu_custom_call.1} parent=1 // pred_region
      %75 = dma.done [#allocation5], 256
    $region33: #{tpu_custom_call.1} parent=1 // pred_fallthru
      _
    %s76 = sld [smem:[#allocation3]]
    %p77 = scmp.lt.s32.totalorder %s76, 3
    %s78 = scalar_select %p77, %s76, 3
    %s79 = scalar_lea.vmem %s3, %s78
    %s80 = sld [smem:[#allocation3]]
    %p81 = scmp.lt.s32.totalorder %s80, 3
    %s82 = scalar_select %p81, %s80, 3
    %s83 = smul.addr %s82, 16
    %s84 = smul.addr %s83, 8
    %s85 = scalar_lea.vmem %s4, %s84
    %s86 = sld [smem:[#allocation3]]
    %p87 = scmp.lt.s32.totalorder %s86, 3
    %s88 = scalar_select %p87, %s86, 3
    %s89 = scalar_lea.vmem %s5, %s88
    %s90 = sld [smem:[#allocation3]]
    %p91 = scmp.lt.s32.totalorder %s90, 3
    %s92 = scalar_select %p91, %s90, 3
    %s93 = smul.addr %s92, 16
    %s94 = smul.addr %s93, 8
    %s95 = scalar_lea.vmem %s6, %s94
    %s96 = sld [smem:[#allocation3]]
    %p97 = scmp.lt.s32.totalorder %s96, 3
    %s98 = scalar_select %p97, %s96, 3
    %s99 = scalar_lea.vmem %s7, %s98
    %s100 = sld [smem:[#allocation3]]
    %s101 = sld [smem:[#allocation3]]
    %p102 = scmp.lt.s32.totalorder %s101, 3
    %s103 = scalar_select %p102, %s101, 3
    %s104 = scalar_lea.vmem %s3, %s103
    %s105 = sld [smem:[#allocation3]]
    %s106 = sld [smem:[#allocation3]]
    %p107 = scmp.lt.s32.totalorder %s106, 3
    %s108 = scalar_select %p107, %s106, 3
    %s109 = smul.addr %s108, 16
    %s110 = smul.addr %s109, 8
    %s111 = scalar_lea.vmem %s4, %s110
    %s112 = sld [smem:[#allocation3]]
    %s113 = sld [smem:[#allocation3]]
    %p114 = scmp.lt.s32.totalorder %s113, 3
    %s115 = scalar_select %p114, %s113, 3
    %s116 = scalar_lea.vmem %s5, %s115
    %s117 = sld [smem:[#allocation3]]
    %s118 = sld [smem:[#allocation3]]
    %p119 = scmp.lt.s32.totalorder %s118, 3
    %s120 = scalar_select %p119, %s118, 3
    %s121 = smul.addr %s120, 16
    %s122 = smul.addr %s121, 8
    %s123 = scalar_lea.vmem %s6, %s122
    %s124 = sld [smem:[#allocation3]]
    %s125 = sld [smem:[#allocation3]]
    %p126 = scmp.lt.s32.totalorder %s125, 3
    %s127 = scalar_select %p126, %s125, 3
    %s128 = scalar_lea.vmem %s7, %s127
    %s129 = sld [smem:[#allocation3]]
    %v130 = vld [vmem:[%s1] sm:$0xff]
    %v131 = vld [vmem:[#allocation4] sm:$0xff]
    %v132 = vld [vmem:[#allocation4 + $0x8] sm:$0xff]
    %v133 = vld [vmem:[%s104] sm:$0x1]
    %v135 = vlaneseq
    %v136 = vshrl.u32 %v135, 7
    %v137 = vsub.s32 0, %v136
    %v138 = vrot.slane %v133, %v137
    %vm140 = vcmask 130048
    %v142 = vsel %vm140, %v130, 0
    %144 = vmatprep.subr.mxu0 0.0
    %145 = vmatpush1.msra.mxu0 0.0
    %146 = vmatprep.subr.mxu0 0.0
    %147 = vmatpush1.msra.mxu0 0.0
    %148 = vmatprep.subr.mxu0 0.0
    %149 = vmatpush1.msra.mxu0 0.0
    %150 = vmatprep.subr.mxu0 0.0
    %151 = vmatpush1.msra.mxu0 0.0
    %152 = vmatprep.subr.mxu0 0.0
    %153 = vmatpush1.msra.mxu0 0.0
    %154 = vmatprep.subr.mxu0 0.0
    %155 = vmatpush1.msra.mxu0 0.0
    %156 = vmatprep.subr.mxu0 0.0
    %157 = vmatpush1.msra.mxu0 0.0
    %158 = vmatprep.subr.mxu0 0.0
    %159 = vmatpush1.msra.mxu0 0.0
    %160 = vmatprep.subr.mxu0 0.0
    %161 = vmatpush1.msra.mxu0 0.0
    %162 = vmatprep.subr.mxu0 0.0
    %163 = vmatpush1.msra.mxu0 0.0
    %164 = vmatprep.subr.mxu0 0.0
    %165 = vmatpush1.msra.mxu0 0.0
    %166 = vmatprep.subr.mxu0 0.0
    %167 = vmatpush1.msra.mxu0 0.0
    %168 = vmatprep.subr.mxu0 0.0
    %169 = vmatpush1.msra.mxu0 0.0
    %170 = vmatprep.subr.mxu0 0.0
    %171 = vmatpush1.msra.mxu0 0.0
    %172 = vmatprep.subr.mxu0 0.0
    %173 = vmatpush1.msra.mxu0 %v132
    %174 = vmatprep.subr.mxu0 0.0
    %175 = vmatpush1.msra.mxu0 %v131
    %176 = vmatprep.subr.mxu0 0.0
    %177 = vmatpush2.msra.mxu0 0.0
    %178 = vmatprep.subr.mxu0 0.0
    %179 = vmatpush2.msra.mxu0 0.0
    %180 = vmatprep.subr.mxu0 0.0
    %181 = vmatpush2.msra.mxu0 0.0
    %182 = vmatprep.subr.mxu0 0.0
    %183 = vmatpush2.msra.mxu0 0.0
    %184 = vmatprep.subr.mxu0 0.0
    %185 = vmatpush2.msra.mxu0 0.0
    %186 = vmatprep.subr.mxu0 0.0
    %187 = vmatpush2.msra.mxu0 0.0
    %188 = vmatprep.subr.mxu0 0.0
    %189 = vmatpush2.msra.mxu0 0.0
    %190 = vmatprep.subr.mxu0 0.0
    %191 = vmatpush2.msra.mxu0 0.0
    %192 = vmatprep.subr.mxu0 0.0
    %193 = vmatpush2.msra.mxu0 0.0
    %194 = vmatprep.subr.mxu0 0.0
    %195 = vmatpush2.msra.mxu0 0.0
    %196 = vmatprep.subr.mxu0 0.0
    %197 = vmatpush2.msra.mxu0 0.0
    %198 = vmatprep.subr.mxu0 0.0
    %199 = vmatpush2.msra.mxu0 0.0
    %200 = vmatprep.subr.mxu0 0.0
    %201 = vmatpush2.msra.mxu0 0.0
    %202 = vmatprep.subr.mxu0 0.0
    %203 = vmatpush2.msra.mxu0 0.0
    %204 = vmatprep.subr.mxu0 0.0
    %205 = vmatpush2.msra.mxu0 0.0
    %206 = vmatprep.subr.mxu0 0.0
    %207 = vmatpush2.msra.mxu0 0.0
    %208 = vmatprep.mubr.f32.mxu0 0.0
    %209 = vmatmul.mubr.f32.gmra.mxu0 %v142
    %v210 = vpop.f32.mrf.mxu0
    %v211 = vadd.f32 %v138, %v210
    %v212 = vpop.f32.mrf.mxu0
    %213 = vdwg.mxu0
    %v214 = vmax.f32 %v211, 0.0
    %v215 = vld [vmem:[%s111] sm:$0xff]
    %v216 = vld [vmem:[%s111 + $0x8] sm:$0xff]
    %v217 = vld [vmem:[%s111 + $0x10] sm:$0xff]
    %v218 = vld [vmem:[%s111 + $0x18] sm:$0xff]
    %v219 = vld [vmem:[%s111 + $0x20] sm:$0xff]
    %v220 = vld [vmem:[%s111 + $0x28] sm:$0xff]
    %v221 = vld [vmem:[%s111 + $0x30] sm:$0xff]
    %v222 = vld [vmem:[%s111 + $0x38] sm:$0xff]
    %v223 = vld [vmem:[%s111 + $0x40] sm:$0xff]
    %v224 = vld [vmem:[%s111 + $0x48] sm:$0xff]
    %v225 = vld [vmem:[%s111 + $0x50] sm:$0xff]
    %v226 = vld [vmem:[%s111 + $0x58] sm:$0xff]
    %v227 = vld [vmem:[%s111 + $0x60] sm:$0xff]
    %v228 = vld [vmem:[%s111 + $0x68] sm:$0xff]
    %v229 = vld [vmem:[%s111 + $0x70] sm:$0xff]
    %v230 = vld [vmem:[%s111 + $0x78] sm:$0xff]
    %v231 = vld [vmem:[%s116] sm:$0x1]
    %v233 = vlaneseq
    %v234 = vshrl.u32 %v233, 7
    %v235 = vsub.s32 0, %v234
    %v236 = vrot.slane %v231, %v235
    %238 = vmatprep.subr.mxu0 0.0
    %239 = vmatpush1.msra.mxu0 %v230
    %240 = vmatprep.subr.mxu0 0.0
    %241 = vmatpush1.msra.mxu0 %v229
    %242 = vmatprep.subr.mxu0 0.0
    %243 = vmatpush1.msra.mxu0 %v228
    %244 = vmatprep.subr.mxu0 0.0
    %245 = vmatpush1.msra.mxu0 %v227
    %246 = vmatprep.subr.mxu0 0.0
    %247 = vmatpush1.msra.mxu0 %v226
    %248 = vmatprep.subr.mxu0 0.0
    %249 = vmatpush1.msra.mxu0 %v225
    %250 = vmatprep.subr.mxu0 0.0
    %251 = vmatpush1.msra.mxu0 %v224
    %252 = vmatprep.subr.mxu0 0.0
    %253 = vmatpush1.msra.mxu0 %v223
    %254 = vmatprep.subr.mxu0 0.0
    %255 = vmatpush1.msra.mxu0 %v222
    %256 = vmatprep.subr.mxu0 0.0
    %257 = vmatpush1.msra.mxu0 %v221
    %258 = vmatprep.subr.mxu0 0.0
    %259 = vmatpush1.msra.mxu0 %v220
    %260 = vmatprep.subr.mxu0 0.0
    %261 = vmatpush1.msra.mxu0 %v219
    %262 = vmatprep.subr.mxu0 0.0
    %263 = vmatpush1.msra.mxu0 %v218
    %264 = vmatprep.subr.mxu0 0.0
    %265 = vmatpush1.msra.mxu0 %v217
    %266 = vmatprep.subr.mxu0 0.0
    %267 = vmatpush1.msra.mxu0 %v216
    %268 = vmatprep.subr.mxu0 0.0
    %269 = vmatpush1.msra.mxu0 %v215
    %270 = vmatprep.subr.mxu0 0.0
    %271 = vmatpush2.msra.mxu0 0.0
    %272 = vmatprep.subr.mxu0 0.0
    %273 = vmatpush2.msra.mxu0 0.0
    %274 = vmatprep.subr.mxu0 0.0
    %275 = vmatpush2.msra.mxu0 0.0
    %276 = vmatprep.subr.mxu0 0.0
    %277 = vmatpush2.msra.mxu0 0.0
    %278 = vmatprep.subr.mxu0 0.0
    %279 = vmatpush2.msra.mxu0 0.0
    %280 = vmatprep.subr.mxu0 0.0
    %281 = vmatpush2.msra.mxu0 0.0
    %282 = vmatprep.subr.mxu0 0.0
    %283 = vmatpush2.msra.mxu0 0.0
    %284 = vmatprep.subr.mxu0 0.0
    %285 = vmatpush2.msra.mxu0 0.0
    %286 = vmatprep.subr.mxu0 0.0
    %287 = vmatpush2.msra.mxu0 0.0
    %288 = vmatprep.subr.mxu0 0.0
    %289 = vmatpush2.msra.mxu0 0.0
    %290 = vmatprep.subr.mxu0 0.0
    %291 = vmatpush2.msra.mxu0 0.0
    %292 = vmatprep.subr.mxu0 0.0
    %293 = vmatpush2.msra.mxu0 0.0
    %294 = vmatprep.subr.mxu0 0.0
    %295 = vmatpush2.msra.mxu0 0.0
    %296 = vmatprep.subr.mxu0 0.0
    %297 = vmatpush2.msra.mxu0 0.0
    %298 = vmatprep.subr.mxu0 0.0
    %299 = vmatpush2.msra.mxu0 0.0
    %300 = vmatprep.subr.mxu0 0.0
    %301 = vmatpush2.msra.mxu0 0.0
    %302 = vmatprep.mubr.f32.mxu0 0.0
    %303 = vmatmul.mubr.f32.gmra.mxu0 %v214
    %v304 = vpop.f32.mrf.mxu0
    %v305 = vadd.f32 %v236, %v304
    %v306 = vpop.f32.mrf.mxu0
    %307 = vdwg.mxu0
    %v308 = vmax.f32 %v305, 0.0
    %v309 = vld [vmem:[%s123] sm:$0xff]
    %v310 = vld [vmem:[%s123 + $0x8] sm:$0xff]
    %v311 = vld [vmem:[%s123 + $0x10] sm:$0xff]
    %v312 = vld [vmem:[%s123 + $0x18] sm:$0xff]
    %v313 = vld [vmem:[%s123 + $0x20] sm:$0xff]
    %v314 = vld [vmem:[%s123 + $0x28] sm:$0xff]
    %v315 = vld [vmem:[%s123 + $0x30] sm:$0xff]
    %v316 = vld [vmem:[%s123 + $0x38] sm:$0xff]
    %v317 = vld [vmem:[%s123 + $0x40] sm:$0xff]
    %v318 = vld [vmem:[%s123 + $0x48] sm:$0xff]
    %v319 = vld [vmem:[%s123 + $0x50] sm:$0xff]
    %v320 = vld [vmem:[%s123 + $0x58] sm:$0xff]
    %v321 = vld [vmem:[%s123 + $0x60] sm:$0xff]
    %v322 = vld [vmem:[%s123 + $0x68] sm:$0xff]
    %v323 = vld [vmem:[%s123 + $0x70] sm:$0xff]
    %v324 = vld [vmem:[%s123 + $0x78] sm:$0xff]
    %v325 = vld [vmem:[%s128] sm:$0x1]
    %v327 = vlaneseq
    %v328 = vshrl.u32 %v327, 7
    %v329 = vsub.s32 0, %v328
    %v330 = vrot.slane %v325, %v329
    %332 = vmatprep.subr.mxu0 0.0
    %333 = vmatpush1.msra.mxu0 %v324
    %334 = vmatprep.subr.mxu0 0.0
    %335 = vmatpush1.msra.mxu0 %v323
    %336 = vmatprep.subr.mxu0 0.0
    %337 = vmatpush1.msra.mxu0 %v322
    %338 = vmatprep.subr.mxu0 0.0
    %339 = vmatpush1.msra.mxu0 %v321
    %340 = vmatprep.subr.mxu0 0.0
    %341 = vmatpush1.msra.mxu0 %v320
    %342 = vmatprep.subr.mxu0 0.0
    %343 = vmatpush1.msra.mxu0 %v319
    %344 = vmatprep.subr.mxu0 0.0
    %345 = vmatpush1.msra.mxu0 %v318
    %346 = vmatprep.subr.mxu0 0.0
    %347 = vmatpush1.msra.mxu0 %v317
    %348 = vmatprep.subr.mxu0 0.0
    %349 = vmatpush1.msra.mxu0 %v316
    %350 = vmatprep.subr.mxu0 0.0
    %351 = vmatpush1.msra.mxu0 %v315
    %352 = vmatprep.subr.mxu0 0.0
    %353 = vmatpush1.msra.mxu0 %v314
    %354 = vmatprep.subr.mxu0 0.0
    %355 = vmatpush1.msra.mxu0 %v313
    %356 = vmatprep.subr.mxu0 0.0
    %357 = vmatpush1.msra.mxu0 %v312
    %358 = vmatprep.subr.mxu0 0.0
    %359 = vmatpush1.msra.mxu0 %v311
    %360 = vmatprep.subr.mxu0 0.0
    %361 = vmatpush1.msra.mxu0 %v310
    %362 = vmatprep.subr.mxu0 0.0
    %363 = vmatpush1.msra.mxu0 %v309
    %364 = vmatprep.subr.mxu0 0.0
    %365 = vmatpush2.msra.mxu0 0.0
    %366 = vmatprep.subr.mxu0 0.0
    %367 = vmatpush2.msra.mxu0 0.0
    %368 = vmatprep.subr.mxu0 0.0
    %369 = vmatpush2.msra.mxu0 0.0
    %370 = vmatprep.subr.mxu0 0.0
    %371 = vmatpush2.msra.mxu0 0.0
    %372 = vmatprep.subr.mxu0 0.0
    %373 = vmatpush2.msra.mxu0 0.0
    %374 = vmatprep.subr.mxu0 0.0
    %375 = vmatpush2.msra.mxu0 0.0
    %376 = vmatprep.subr.mxu0 0.0
    %377 = vmatpush2.msra.mxu0 0.0
    %378 = vmatprep.subr.mxu0 0.0
    %379 = vmatpush2.msra.mxu0 0.0
    %380 = vmatprep.subr.mxu0 0.0
    %381 = vmatpush2.msra.mxu0 0.0
    %382 = vmatprep.subr.mxu0 0.0
    %383 = vmatpush2.msra.mxu0 0.0
    %384 = vmatprep.subr.mxu0 0.0
    %385 = vmatpush2.msra.mxu0 0.0
    %386 = vmatprep.subr.mxu0 0.0
    %387 = vmatpush2.msra.mxu0 0.0
    %388 = vmatprep.subr.mxu0 0.0
    %389 = vmatpush2.msra.mxu0 0.0
    %390 = vmatprep.subr.mxu0 0.0
    %391 = vmatpush2.msra.mxu0 0.0
    %392 = vmatprep.subr.mxu0 0.0
    %393 = vmatpush2.msra.mxu0 0.0
    %394 = vmatprep.subr.mxu0 0.0
    %395 = vmatpush2.msra.mxu0 0.0
    %396 = vmatprep.mubr.f32.mxu0 0.0
    %397 = vmatmul.mubr.f32.gmra.mxu0 %v308
    %v398 = vpop.f32.mrf.mxu0
    %v399 = vadd.f32 %v330, %v398
    %v400 = vpop.f32.mrf.mxu0
    %401 = vdwg.mxu0
    %vm402 = vcmask 31744
    %403 = vst.msk [vmem:[#allocation7] sm:$0xff] %vm402, %v399
    // Predicated region
    $region34: #{tpu_custom_call.1} parent=1 // pred_check
      _
    $region35: #{tpu_custom_call.1} parent=1 // pred_check_branch
      %405 = sbr.rel (0) target = $region37
    $region36: #{tpu_custom_call.1} parent=1 // pred_region
      %s407 = ssub.s32 128, 32
      %408 = vsyncadd [#allocation6], %s407
      %s409 = sshll.u32 [#allocation7], 4
      %s410 = int_to_ptr.vmem [resolvable:$true] %s409
      %415 = dma.vmem_to_hbm [thread:$0]  %s410, 32, %s8, [#allocation6], 32, 32, 2
    $region37: #{tpu_custom_call.1} parent=1 // pred_fallthru
      _
    // Predicated region
    $region38: #{tpu_custom_call.1} parent=1 // pred_check
      _
    $region39: #{tpu_custom_call.1} parent=1 // pred_check_branch
      %417 = sbr.rel (0) target = $region41
    $region40: #{tpu_custom_call.1} parent=1 // pred_region
      %418 = dma.done [#allocation6], 128
    $region41: #{tpu_custom_call.1} parent=1 // pred_fallthru
      _
    %419 = vsyncpa [#allocation5], 1
    %420 = vsyncpa [#allocation6], 1

</llo_original>
